<compile_context>
chip_gen: v7x
topology: tpu7x:2x2x1
jax: 0.10.0
libtpu: 0.0.40
codegen_flags: <defaults>
</compile_context>

<pallas_src>
import jax
import jax.numpy as jnp
from jax.experimental import pallas as pl
from jax.experimental.pallas import tpu as pltpu


_VMEM_BUDGET_BYTES = 48 * 1024 * 1024   # block-payload budget, safe on v5e/v6e/v7x


def _choose_block_n(n, c, hw, itemsize):
    """Images per grid step: fill VMEM, but keep >=2 grid steps when N >= 2."""
    per_image = c * hw * itemsize
    # double-buffered input + output blocks ~= 4 * BN * per_image
    bn = max(1, _VMEM_BUDGET_BYTES // (4 * per_image))
    bn = min(bn, n)
    if n >= 2:
        bn = min(bn, n // 2)        # v7x: 2 TensorCores shard the parallel axis
    while n % bn:                   # keep blocks exact (no ragged last block)
        bn -= 1
    return bn


def _channel_attention_kernel(x_ref, w1_ref, w2_ref, o_ref):
    # x_ref / o_ref: (BN, C, HW)    w1_ref: (Cr, C)    w2_ref: (C, Cr)
    bn, _, hw = x_ref.shape
    inv_hw = 1.0 / hw
    ones_hw = jnp.ones((hw, 1), dtype=x_ref.dtype)

    # --- per-image pooling on the native-dtype ref (no full-slab f32 copy) ---
    cols = []
    for b in range(bn):                                    # static unroll, BN small
        x_b = x_ref[b]                                     # (C, HW) native dtype
        max_b = jnp.max(x_b, axis=-1, keepdims=True)       # (C, 1), exact in bf16
        sum_b = jnp.dot(x_b, ones_hw,                      # MXU: f32 accumulation
                        preferred_element_type=jnp.float32)
        cols.append(max_b.astype(jnp.float32))
        cols.append(sum_b * inv_hw)
    p = jnp.concatenate(cols, axis=1)                      # (C, 2*BN) f32

    # --- shared MLP: both branches / all images in one pair of tiny matmuls ---
    w1 = w1_ref[...].astype(jnp.float32)                   # (Cr, C)
    w2 = w2_ref[...].astype(jnp.float32)                   # (C, Cr)
    h = jnp.maximum(jnp.dot(w1, p, preferred_element_type=jnp.float32), 0.0)
    y = jnp.dot(w2, h, preferred_element_type=jnp.float32)  # (C, 2*BN)

    # --- sigmoid gate + scale: re-read the native-dtype slab, packed multiply ---
    for b in range(bn):
        gate = jax.nn.sigmoid(y[:, 2 * b:2 * b + 1] +
                              y[:, 2 * b + 1:2 * b + 2])    # (C, 1) f32
        o_ref[b] = x_ref[b] * gate.astype(o_ref.dtype)      # (C, HW) lane-dense store


def channel_attention(x_nchw, w1, w2):
    """x_nchw: (N, C, H, W); w1: (Cr, C, 1, 1); w2: (C, Cr, 1, 1)."""
    n, c, h, w = x_nchw.shape
    cr = w1.shape[0]
    hw = h * w
    itemsize = jnp.dtype(x_nchw.dtype).itemsize

    # TODO(synk): if HW is not a multiple of 128 (e.g. 7x7 / 14x14 maps), switch
    # to an (HW, C) lane layout with C on lanes (sublane pooling + sublane gate
    # broadcast) to keep output stores unmasked.
    x_flat = x_nchw.reshape(n, c, hw)   # contiguous reshape: no transpose, no copy
    w1_mat = w1.reshape(cr, c)
    w2_mat = w2.reshape(c, cr)

    bn = _choose_block_n(n, c, hw, itemsize)
    grid = (n // bn,)

    cost = pl.CostEstimate(
        flops=int(n * (3 * c * hw + 8 * c * cr)),
        transcendentals=int(n * c),
        bytes_accessed=int(2 * n * c * hw * itemsize
                           + 2 * c * cr * jnp.dtype(w1.dtype).itemsize),
    )

    out_flat = pl.pallas_call(
        _channel_attention_kernel,
        out_shape=jax.ShapeDtypeStruct((n, c, hw), x_nchw.dtype),
        grid_spec=pltpu.PrefetchScalarGridSpec(
            num_scalar_prefetch=0,
            grid=grid,
            in_specs=[
                pl.BlockSpec((bn, c, hw), lambda i: (i, 0, 0)),
                pl.BlockSpec((cr, c), lambda i: (0, 0)),
                pl.BlockSpec((c, cr), lambda i: (0, 0)),
            ],
            out_specs=pl.BlockSpec((bn, c, hw), lambda i: (i, 0, 0)),
        ),
        compiler_params=pltpu.CompilerParams(
            dimension_semantics=("parallel",),
            vmem_limit_bytes=56 * 1024 * 1024,   # under v7x's 64 MiB physical
        ),
        cost_estimate=cost,
    )(x_flat, w1_mat, w2_mat)

    return out_flat.reshape(n, c, h, w)


if __name__ == "__main__":
    key = jax.random.PRNGKey(0)
    k_x, k_w1, k_w2 = jax.random.split(key, 3)

    N, C, H, W = 2, 4, 16, 16
    R = 0.5
    CR = int(C * R)          # hidden width of the shared MLP

    x = jax.random.normal(k_x, (N, C, H, W), dtype=jnp.float32)
    w1 = jax.random.normal(k_w1, (CR, C, 1, 1), dtype=jnp.float32) * 0.5
    w2 = jax.random.normal(k_w2, (C, CR, 1, 1), dtype=jnp.float32) * 0.5

    out = channel_attention(x, w1, w2)
    out = jax.block_until_ready(out)

    # pure-JAX reference of the PyTorch forward
    W1 = w1.reshape(CR, C)
    W2 = w2.reshape(C, CR)
    mp = jnp.max(x, axis=(2, 3), keepdims=True)
    ap = jnp.mean(x, axis=(2, 3), keepdims=True)

    def mlp_ref(p):
        hdn = jnp.einsum("oc,nchw->nohw", W1, p)
        hdn = jnp.maximum(hdn, 0.0)
        return jnp.einsum("oc,nchw->nohw", W2, hdn)

    gate = jax.nn.sigmoid(mlp_ref(mp) + mlp_ref(ap))
    y_ref = x * gate

    assert out.shape == (N, C, H, W)
    assert jnp.allclose(out, y_ref, atol=1e-4, rtol=1e-4)
    print("KERNEL_OK")
</pallas_src>

<mosaic_0001>
module attributes {stable_mosaic.version = 11 : i64} {
  func.func @_channel_attention_kernel(%arg0: i32, %arg1: memref<1x4x256xf32, #tpu.memory_space<vmem>>, %arg2: memref<2x4xf32, #tpu.memory_space<vmem>>, %arg3: memref<4x2xf32, #tpu.memory_space<vmem>>, %arg4: memref<1x4x256xf32, #tpu.memory_space<vmem>>) attributes {dimension_semantics = [#tpu.dimension_semantics<parallel>], iteration_bounds = array<i64: 2>, scalar_prefetch = 0 : i64, scratch_operands = 0 : i64, tpu.core_type = #tpu.core_type<tc>, window_params = [{transform_indices = @transform_0, window_bounds = array<i64: 1, 4, 256>}, {pipeline_mode = #tpu.pipeline_mode<synchronous>, transform_indices = @transform_1, window_bounds = array<i64: 2, 4>}, {pipeline_mode = #tpu.pipeline_mode<synchronous>, transform_indices = @transform_2, window_bounds = array<i64: 4, 2>}, {transform_indices = @transform_3, window_bounds = array<i64: 1, 4, 256>}]} {
    %cst = arith.constant 1.000000e+00 : f32
    %0 = vector.broadcast %cst : f32 to vector<256x1xf32>
    %c0 = arith.constant 0 : index
    %c0_0 = arith.constant 0 : index
    %c0_1 = arith.constant 0 : index
    %1 = vector.load %arg1[%c0, %c0_0, %c0_1] : memref<1x4x256xf32, #tpu.memory_space<vmem>>, vector<1x4x256xf32>
    %2 = vector.shape_cast %1 : vector<1x4x256xf32> to vector<4x256xf32>
    %cst_2 = arith.constant dense<0xFF800000> : vector<4xf32>
    %3 = vector.multi_reduction <maximumf>, %2, %cst_2 [1] : vector<4x256xf32> to vector<4xf32>
    %4 = vector.shape_cast %3 : vector<4xf32> to vector<4x1xf32>
    %cst_3 = arith.constant dense<0.000000e+00> : vector<4x1xf32>
    %5 = tpu.matmul %2, %0, %cst_3 {dimension_numbers = #tpu.dot_dimension_numbers<[1], [0], [0], [1], [0, 0, 1, 1], [], []>} : vector<4x256xf32>, vector<256x1xf32>, vector<4x1xf32> -> vector<4x1xf32>
    %cst_4 = arith.constant 3.906250e-03 : f32
    %6 = vector.broadcast %cst_4 : f32 to vector<4x1xf32>
    %7 = arith.mulf %5, %6 : vector<4x1xf32>
    %8 = tpu.concatenate %4, %7 in 1 : vector<4x1xf32>, vector<4x1xf32> -> vector<4x2xf32>
    %c0_5 = arith.constant 0 : index
    %c0_6 = arith.constant 0 : index
    %9 = vector.load %arg2[%c0_5, %c0_6] : memref<2x4xf32, #tpu.memory_space<vmem>>, vector<2x4xf32>
    %c0_7 = arith.constant 0 : index
    %c0_8 = arith.constant 0 : index
    %10 = vector.load %arg3[%c0_7, %c0_8] : memref<4x2xf32, #tpu.memory_space<vmem>>, vector<4x2xf32>
    %cst_9 = arith.constant dense<0.000000e+00> : vector<2x2xf32>
    %11 = tpu.matmul %9, %8, %cst_9 {dimension_numbers = #tpu.dot_dimension_numbers<[1], [0], [0], [1], [0, 0, 1, 1], [], []>} : vector<2x4xf32>, vector<4x2xf32>, vector<2x2xf32> -> vector<2x2xf32>
    %cst_10 = arith.constant 0.000000e+00 : f32
    %12 = vector.broadcast %cst_10 : f32 to vector<2x2xf32>
    %13 = arith.maximumf %11, %12 : vector<2x2xf32>
    %cst_11 = arith.constant dense<0.000000e+00> : vector<4x2xf32>
    %14 = tpu.matmul %10, %13, %cst_11 {dimension_numbers = #tpu.dot_dimension_numbers<[1], [0], [0], [1], [0, 0, 1, 1], [], []>} : vector<4x2xf32>, vector<2x2xf32>, vector<4x2xf32> -> vector<4x2xf32>
    %15 = vector.extract_strided_slice %14 {offsets = [0, 0], sizes = [4, 1], strides = [1, 1]} : vector<4x2xf32> to vector<4x1xf32>
    %16 = vector.extract_strided_slice %14 {offsets = [0, 1], sizes = [4, 1], strides = [1, 1]} : vector<4x2xf32> to vector<4x1xf32>
    %17 = arith.addf %15, %16 : vector<4x1xf32>
    %18 = arith.negf %17 : vector<4x1xf32>
    %19 = math.exp %18 : vector<4x1xf32>
    %cst_12 = arith.constant 1.000000e+00 : f32
    %20 = vector.broadcast %cst_12 : f32 to vector<4x1xf32>
    %21 = arith.addf %20, %19 : vector<4x1xf32>
    %22 = arith.divf %20, %21 : vector<4x1xf32>
    %c0_13 = arith.constant 0 : index
    %c0_14 = arith.constant 0 : index
    %c0_15 = arith.constant 0 : index
    %23 = vector.load %arg1[%c0_13, %c0_14, %c0_15] : memref<1x4x256xf32, #tpu.memory_space<vmem>>, vector<1x4x256xf32>
    %24 = vector.shape_cast %23 : vector<1x4x256xf32> to vector<4x256xf32>
    %25 = vector.broadcast %22 : vector<4x1xf32> to vector<4x256xf32>
    %26 = arith.mulf %24, %25 : vector<4x256xf32>
    %c0_16 = arith.constant 0 : index
    %c0_17 = arith.constant 0 : index
    %c0_18 = arith.constant 0 : index
    %27 = vector.load %arg4[%c0_16, %c0_17, %c0_18] : memref<1x4x256xf32, #tpu.memory_space<vmem>>, vector<1x4x256xf32>
    %28 = vector.shape_cast %27 : vector<1x4x256xf32> to vector<4x256xf32>
    %29 = vector.shape_cast %26 : vector<4x256xf32> to vector<1x4x256xf32>
    tpu.vector_store %arg4[%c0_16, %c0_17, %c0_18], %29 {strides = array<i32>} : memref<1x4x256xf32, #tpu.memory_space<vmem>>, vector<1x4x256xf32>,
    return
  }
  func.func @transform_0(%arg0: i32) -> (i32, i32, i32) {
    %c0_i32 = arith.constant 0 : i32
    %c0_i32_0 = arith.constant 0 : i32
    %c0_i32_1 = arith.constant 0 : i32
    return %arg0, %c0_i32, %c0_i32_0 : i32, i32, i32
  }
  func.func @transform_1(%arg0: i32) -> (i32, i32) {
    %c0_i32 = arith.constant 0 : i32
    %c0_i32_0 = arith.constant 0 : i32
    %c0_i32_1 = arith.constant 0 : i32
    return %c0_i32, %c0_i32_0 : i32, i32
  }
  func.func @transform_2(%arg0: i32) -> (i32, i32) {
    %c0_i32 = arith.constant 0 : i32
    %c0_i32_0 = arith.constant 0 : i32
    %c0_i32_1 = arith.constant 0 : i32
    return %c0_i32, %c0_i32_0 : i32, i32
  }
  func.func @transform_3(%arg0: i32) -> (i32, i32, i32) {
    %c0_i32 = arith.constant 0 : i32
    %c0_i32_0 = arith.constant 0 : i32
    %c0_i32_1 = arith.constant 0 : i32
    return %arg0, %c0_i32, %c0_i32_0 : i32, i32, i32
  }
}

</mosaic_0001>

<llo_original>
// kernel: tpu_custom_call.1
$region0: #{tpu_custom_call.1}
  #allocation0 [shape = 'u32[]', space=smem, size = 0x4, offset = 0x4, fixed_abs, tag = 'smem constant byte address 0x4 - core index']
  #allocation1 [shape = 'u32[144,128]{1,0:T(1,128)}', space=vmem, size = 0x12000, scoped, tag = 'internal scratch']
  %s0 = inlined_call_operand.hbm [shape: f32[2,4,256], index: 0, kind: input, shape index: {}]
  %s1 = inlined_call_operand.vmem [shape: f32[2,4], index: 1, kind: input, shape index: {}]
  %s2 = inlined_call_operand.vmem [shape: f32[4,2], index: 2, kind: input, shape index: {}]
  %s3 = inlined_call_operand.hbm [shape: f32[2,4,256], index: 3, kind: output, shape index: {}]
  %s4 = sld [smem:[#allocation0]]
  $region49: #{tpu_custom_call.1} parent=0
    _
  %s6 = ssub.s32 1, %s4
  %s7 = scalar_select 0, %s6, %s4
  $region1: #{tpu_custom_call.1} parent=0
    #allocation2 [shape = 'u8[8192]{0}', space=vmem, size = 0x2000, scoped, tag = 'input window, operand 0']
    #allocation3 [shape = 's32[2]{0}', space=sflag, size = 0x8, scoped, tag = 'scoped memory for tpu_custom_call.1']
    #allocation4 [shape = 's32[2]{0}', space=sflag, size = 0x8, scoped, tag = 'scoped memory for tpu_custom_call.1']
    #allocation5 [shape = 'u8[8192]{0}', space=vmem, size = 0x2000, scoped, tag = 'output window, operand 0']
    %8 = vsyncpa [#allocation3], 0
    %s9 = scalar_lea.sflag [#allocation3], 1
    %10 = vsyncpa %s9, 0
    %11 = vsyncpa [#allocation4], 0
    %s12 = scalar_lea.sflag [#allocation4], 1
    %13 = vsyncpa %s12, 0
    loop: start=0, step=1, limit=4
    $region2: #{tpu_custom_call.1} parent=1 // loop_pre_header
      _
    $region3: #{tpu_custom_call.1} parent=1 // loop_header
      %s15 = sphi 0, %s19
      %p16 = scmp.ge.s32.totalorder %s15, 4
      %s25 = sphi 0, %s27
      %s28 = sphi 0, %s25
      %s29 = sphi 0, %s28
      %s45 = sphi 0, %s29
      %s49 = sphi 0, %s49
      %s51 = sphi 0, %s49
      %s52 = sphi 0, %s51
      %s66 = sphi 0, %s52
      %s70 = sphi 0, %s70
      %s72 = sphi 0, %s70
      %s73 = sphi 0, %s72
      %s87 = sphi 0, %s73
      %s93 = sphi 0, %s95
      %s96 = sphi 0, %s93
      %s97 = sphi 0, %s96
      %s113 = sphi 0, %s97
    $region4: #{tpu_custom_call.1} parent=1 // loop_header_branch
      %18 = sbr.rel (%p16) target = $region8
    $region5: #{tpu_custom_call.1} parent=1 // loop_body
      %s20 = ssub.s32 %s15, 1
      %s21 = ssub.s32 %s15, 2
      %s22 = sadd.s32 %s15, 1
      %s23 = ssub.s32 %s15, %s22
      %p24 = scmp.eq.s32.totalorder %s23, 0
      %s26 = sadd.s32 %s25, 1
      %s27 = scalar_select %p24, %s25, %s26
      %p30 = pneg %p24
      %p31 = scmp.eq.s32.totalorder %s15, 1
      %p32 = por %p30, %p31
      %p33 = scmp.ne.s32.totalorder %s25, %s28
      %p34 = scmp.eq.s32.totalorder %s15, 0
      %p35 = por %p33, %p34
      %p36 = scmp.ne.s32.totalorder %s25, %s28
      %p37 = scmp.eq.s32.totalorder %s20, 1
      %p38 = por %p36, %p37
      %p39 = scmp.ne.s32.totalorder %s28, %s29
      %p40 = scmp.eq.s32.totalorder %s20, 0
      %p41 = por %p39, %p40
      %p42 = scmp.ne.s32.totalorder %s28, %s29
      %p43 = scmp.eq.s32.totalorder %s21, 1
      %p44 = por %p42, %p43
      %p46 = scmp.ne.s32.totalorder %s29, %s45
      %p47 = scmp.eq.s32.totalorder %s21, 0
      %p48 = por %p46, %p47
      %s50 = sadd.s32 %s49, 1
      %p53 = scmp.eq.s32.totalorder %s15, 1
      %p54 = scmp.ne.s32.totalorder %s49, %s51
      %p55 = scmp.eq.s32.totalorder %s15, 0
      %p56 = por %p54, %p55
      %p57 = scmp.ne.s32.totalorder %s49, %s51
      %p58 = scmp.eq.s32.totalorder %s20, 1
      %p59 = por %p57, %p58
      %p60 = scmp.ne.s32.totalorder %s51, %s52
      %p61 = scmp.eq.s32.totalorder %s20, 0
      %p62 = por %p60, %p61
      %p63 = scmp.ne.s32.totalorder %s51, %s52
      %p64 = scmp.eq.s32.totalorder %s21, 1
      %p65 = por %p63, %p64
      %p67 = scmp.ne.s32.totalorder %s52, %s66
      %p68 = scmp.eq.s32.totalorder %s21, 0
      %p69 = por %p67, %p68
      %s71 = sadd.s32 %s70, 1
      %p74 = scmp.eq.s32.totalorder %s15, 1
      %p75 = scmp.ne.s32.totalorder %s70, %s72
      %p76 = scmp.eq.s32.totalorder %s15, 0
      %p77 = por %p75, %p76
      %p78 = scmp.ne.s32.totalorder %s70, %s72
      %p79 = scmp.eq.s32.totalorder %s20, 1
      %p80 = por %p78, %p79
      %p81 = scmp.ne.s32.totalorder %s72, %s73
      %p82 = scmp.eq.s32.totalorder %s20, 0
      %p83 = por %p81, %p82
      %p84 = scmp.ne.s32.totalorder %s72, %s73
      %p85 = scmp.eq.s32.totalorder %s21, 1
      %p86 = por %p84, %p85
      %p88 = scmp.ne.s32.totalorder %s73, %s87
      %p89 = scmp.eq.s32.totalorder %s21, 0
      %p90 = por %p88, %p89
      %s91 = ssub.s32 %s15, %s22
      %p92 = scmp.eq.s32.totalorder %s91, 0
      %s94 = sadd.s32 %s93, 1
      %s95 = scalar_select %p92, %s93, %s94
      %p98 = pneg %p92
      %p99 = scmp.eq.s32.totalorder %s15, 1
      %p100 = por %p98, %p99
      %p101 = scmp.ne.s32.totalorder %s93, %s96
      %p102 = scmp.eq.s32.totalorder %s15, 0
      %p103 = por %p101, %p102
      %p104 = scmp.ne.s32.totalorder %s93, %s96
      %p105 = scmp.eq.s32.totalorder %s20, 1
      %p106 = por %p104, %p105
      %p107 = scmp.ne.s32.totalorder %s96, %s97
      %p108 = scmp.eq.s32.totalorder %s20, 0
      %p109 = por %p107, %p108
      %p110 = scmp.ne.s32.totalorder %s96, %s97
      %p111 = scmp.eq.s32.totalorder %s21, 1
      %p112 = por %p110, %p111
      %p114 = scmp.ne.s32.totalorder %s97, %s113
      %p115 = scmp.eq.s32.totalorder %s21, 0
      %p116 = por %p114, %p115
      %p117 = scmp.le.s32.totalorder 1, %s15
      %p118 = scmp.lt.s32.totalorder %s15, 3
      %p119 = pnand %p117, %p118
      %p120 = pneg %p119
      // Predicated region
      $region9: #{tpu_custom_call.1} parent=5 // pred_check
        _
      $region10: #{tpu_custom_call.1} parent=5 // pred_check_branch
        %122 = sbr.rel (%p119) target = $region12
      $region11: #{tpu_custom_call.1} parent=5 // pred_region
        %s123 = ssub.s32 %s15, 1
        // Predicated region
        $region13: #{tpu_custom_call.1} parent=11 // pred_check
          %p124 = pneg %p62
        $region14: #{tpu_custom_call.1} parent=11 // pred_check_branch
          %126 = sbr.rel (%p124) target = $region16
        $region15: #{tpu_custom_call.1} parent=11 // pred_region
          _
        $region16: #{tpu_custom_call.1} parent=11 // pred_fallthru
          _
        // Predicated region
        $region17: #{tpu_custom_call.1} parent=11 // pred_check
          %p127 = pneg %p83
        $region18: #{tpu_custom_call.1} parent=11 // pred_check_branch
          %129 = sbr.rel (%p127) target = $region20
        $region19: #{tpu_custom_call.1} parent=11 // pred_region
          _
        $region20: #{tpu_custom_call.1} parent=11 // pred_fallthru
          _
      $region12: #{tpu_custom_call.1} parent=5 // pred_fallthru
        _
      %p130 = scmp.lt.s32.totalorder %s15, 2
      // Predicated region
      $region21: #{tpu_custom_call.1} parent=5 // pred_check
        %p131 = pneg %p130
      $region22: #{tpu_custom_call.1} parent=5 // pred_check_branch
        %133 = sbr.rel (%p131) target = $region24
      $region23: #{tpu_custom_call.1} parent=5 // pred_region
        // Predicated region
        $region25: #{tpu_custom_call.1} parent=23 // pred_check
          %p134 = pneg %p35
        $region26: #{tpu_custom_call.1} parent=23 // pred_check_branch
          %136 = sbr.rel (%p134) target = $region28
        $region27: #{tpu_custom_call.1} parent=23 // pred_region
          %s137 = sand.u32 %s25, 1
          %s138 = scalar_lea.sflag [#allocation3], %s137
          %s139 = sand.u32 %s25, 1
          %s140 = smul.addr %s139, 8
          %s141 = scalar_lea.vmem [#allocation2], %s140
          %s143 = ssub.s32 128, 128
          %144 = vsyncadd %s138, %s143
          %s145 = smul.addr %s15, 2
          %s146 = smul.addr %s145, 64
          %s147 = scalar_lea.hbm %s0, %s146
          %s149 = sshll.u32 %s141, 4
          %s150 = int_to_ptr.vmem [resolvable:$true] %s149
          %152 = dma.hbm_to_vmem [thread:$0]  %s147, 128, %s150, %s138
        $region28: #{tpu_custom_call.1} parent=23 // pred_fallthru
          _
      $region24: #{tpu_custom_call.1} parent=5 // pred_fallthru
        _
      %p153 = scmp.le.s32.totalorder 1, %s15
      %p154 = scmp.lt.s32.totalorder %s15, 3
      %p155 = pnand %p153, %p154
      %p156 = pneg %p155
      // Predicated region
      $region29: #{tpu_custom_call.1} parent=5 // pred_check
        _
      $region30: #{tpu_custom_call.1} parent=5 // pred_check_branch
        %158 = sbr.rel (%p155) target = $region32
      $region31: #{tpu_custom_call.1} parent=5 // pred_region
        %s159 = ssub.s32 %s15, 1
        %s160 = sand.u32 %s28, 1
        %s161 = scalar_lea.sflag [#allocation3], %s160
        %s162 = sand.u32 %s28, 1
        %s163 = smul.addr %s162, 8
        %s164 = scalar_lea.vmem [#allocation2], %s163
        // Predicated region
        $region33: #{tpu_custom_call.1} parent=31 // pred_check
          %p165 = pneg %p41
        $region34: #{tpu_custom_call.1} parent=31 // pred_check_branch
          %167 = sbr.rel (%p165) target = $region36
        $region35: #{tpu_custom_call.1} parent=31 // pred_region
          %168 = dma.done %s161, 128
        $region36: #{tpu_custom_call.1} parent=31 // pred_fallthru
          _
        %s169 = sand.u32 %s28, 1
        %s170 = scalar_lea.sflag [#allocation3], %s169
        %s171 = sand.u32 %s28, 1
        %s172 = smul.addr %s171, 8
        %s173 = scalar_lea.vmem [#allocation2], %s172
        %p174 = pneg %p41
        %p175 = pneg %p38
        %p176 = pneg %p62
        %p177 = pneg %p59
        %p178 = pneg %p83
        %p179 = pneg %p80
        %p180 = pneg %p109
        %p181 = pneg %p106
        %s182 = sand.u32 %s96, 1
        %s183 = scalar_lea.sflag [#allocation4], %s182
        %s184 = sand.u32 %s96, 1
        %s185 = smul.addr %s184, 8
        %s186 = scalar_lea.vmem [#allocation5], %s185
        %v187 = vld [vmem:[%s164] sm:$0xff]
        %v189 = vcombine.high %v187, %v187
        %vm191 = vcmask 1043456
        %v192 = vsel %vm191, %v187, -inf
        %v193 = vsel %vm191, %v189, -inf
        %v194 = vmax.f32 %v192, %v193
        %195 = vmax.xlane.f32.xlu0 %v194
        %v196 = vpop.xlane.xlu0 %195
        %197 = vmatprep.subr.mxu0 0.0
        %198 = vmatpush1.msra.mxu0 1.0
        %199 = vmatprep.subr.mxu0 0.0
        %200 = vmatpush1.msra.mxu0 1.0
        %201 = vmatprep.subr.mxu0 0.0
        %202 = vmatpush1.msra.mxu0 1.0
        %203 = vmatprep.subr.mxu0 0.0
        %204 = vmatpush1.msra.mxu0 1.0
        %205 = vmatprep.subr.mxu0 0.0
        %206 = vmatpush1.msra.mxu0 1.0
        %207 = vmatprep.subr.mxu0 0.0
        %208 = vmatpush1.msra.mxu0 1.0
        %209 = vmatprep.subr.mxu0 0.0
        %210 = vmatpush1.msra.mxu0 1.0
        %211 = vmatprep.subr.mxu0 0.0
        %212 = vmatpush1.msra.mxu0 1.0
        %213 = vmatprep.subr.mxu0 0.0
        %214 = vmatpush1.msra.mxu0 1.0
        %215 = vmatprep.subr.mxu0 0.0
        %216 = vmatpush1.msra.mxu0 1.0
        %217 = vmatprep.subr.mxu0 0.0
        %218 = vmatpush1.msra.mxu0 1.0
        %219 = vmatprep.subr.mxu0 0.0
        %220 = vmatpush1.msra.mxu0 1.0
        %221 = vmatprep.subr.mxu0 0.0
        %222 = vmatpush1.msra.mxu0 1.0
        %223 = vmatprep.subr.mxu0 0.0
        %224 = vmatpush1.msra.mxu0 1.0
        %225 = vmatprep.subr.mxu0 0.0
        %226 = vmatpush1.msra.mxu0 1.0
        %227 = vmatprep.subr.mxu0 0.0
        %228 = vmatpush1.msra.mxu0 1.0
        %229 = vmatprep.subr.mxu0 0.0
        %230 = vmatpush1.msra.mxu0 1.0
        %231 = vmatprep.subr.mxu0 0.0
        %232 = vmatpush1.msra.mxu0 1.0
        %233 = vmatprep.subr.mxu0 0.0
        %234 = vmatpush1.msra.mxu0 1.0
        %235 = vmatprep.subr.mxu0 0.0
        %236 = vmatpush1.msra.mxu0 1.0
        %237 = vmatprep.subr.mxu0 0.0
        %238 = vmatpush1.msra.mxu0 1.0
        %239 = vmatprep.subr.mxu0 0.0
        %240 = vmatpush1.msra.mxu0 1.0
        %241 = vmatprep.subr.mxu0 0.0
        %242 = vmatpush1.msra.mxu0 1.0
        %243 = vmatprep.subr.mxu0 0.0
        %244 = vmatpush1.msra.mxu0 1.0
        %245 = vmatprep.subr.mxu0 0.0
        %246 = vmatpush1.msra.mxu0 1.0
        %247 = vmatprep.subr.mxu0 0.0
        %248 = vmatpush1.msra.mxu0 1.0
        %249 = vmatprep.subr.mxu0 0.0
        %250 = vmatpush1.msra.mxu0 1.0
        %251 = vmatprep.subr.mxu0 0.0
        %252 = vmatpush1.msra.mxu0 1.0
        %253 = vmatprep.subr.mxu0 0.0
        %254 = vmatpush1.msra.mxu0 1.0
        %255 = vmatprep.subr.mxu0 0.0
        %256 = vmatpush1.msra.mxu0 1.0
        %257 = vmatprep.subr.mxu0 0.0
        %258 = vmatpush1.msra.mxu0 1.0
        %259 = vmatprep.subr.mxu0 0.0
        %260 = vmatpush1.msra.mxu0 1.0
        %261 = vmatprep.mubr.f32.mxu0 %v189
        %262 = vmatmul.mubr.f32.gmra.mrb[0].mxu0 %v187
        %v263 = vpop.f32.mrb[0].mxu0
        %v264 = vadd.f32 0.0, %v263
        %v265 = vpop.f32.mrb[0].mxu0
        %266 = vdwg.mxu0
        %v267 = vmul.f32 %v264, 0.00390625
        %269 = vrot.lane.b32.xlu0 %v267, 1
        %v270 = vpop.permute.xlu0 %269
        %vm272 = vcmask 7168
        %v273 = vsel %vm272, %v196, %v270
        %v274 = vld [vmem:[%s1] sm:$0x3]
        %v275 = vld [vmem:[%s2] sm:$0xf]
        %vm276 = vcmask 31744
        %v278 = vsel %vm276, %v274, 0
        %v281 = vsel %vm191, %v273, 0
        %283 = vmatprep.subr.mxu0 0.0
        %284 = vmatpush1.msra.mxu0 %v281
        %285 = vmatprep.subr.mxu0 0.0
        %286 = vmatpush1.msra.mxu0 0.0
        %287 = vmatprep.subr.mxu0 0.0
        %288 = vmatpush1.msra.mxu0 0.0
        %289 = vmatprep.subr.mxu0 0.0
        %290 = vmatpush1.msra.mxu0 0.0
        %291 = vmatprep.subr.mxu0 0.0
        %292 = vmatpush1.msra.mxu0 0.0
        %293 = vmatprep.subr.mxu0 0.0
        %294 = vmatpush1.msra.mxu0 0.0
        %295 = vmatprep.subr.mxu0 0.0
        %296 = vmatpush1.msra.mxu0 0.0
        %297 = vmatprep.subr.mxu0 0.0
        %298 = vmatpush1.msra.mxu0 0.0
        %299 = vmatprep.subr.mxu0 0.0
        %300 = vmatpush1.msra.mxu0 0.0
        %301 = vmatprep.subr.mxu0 0.0
        %302 = vmatpush1.msra.mxu0 0.0
        %303 = vmatprep.subr.mxu0 0.0
        %304 = vmatpush1.msra.mxu0 0.0
        %305 = vmatprep.subr.mxu0 0.0
        %306 = vmatpush1.msra.mxu0 0.0
        %307 = vmatprep.subr.mxu0 0.0
        %308 = vmatpush1.msra.mxu0 0.0
        %309 = vmatprep.subr.mxu0 0.0
        %310 = vmatpush1.msra.mxu0 0.0
        %311 = vmatprep.subr.mxu0 0.0
        %312 = vmatpush1.msra.mxu0 0.0
        %313 = vmatprep.subr.mxu0 0.0
        %314 = vmatpush1.msra.mxu0 0.0
        %315 = vmatprep.subr.mxu0 0.0
        %316 = vmatpush1.msra.mxu0 0.0
        %317 = vmatprep.subr.mxu0 0.0
        %318 = vmatpush1.msra.mxu0 0.0
        %319 = vmatprep.subr.mxu0 0.0
        %320 = vmatpush1.msra.mxu0 0.0
        %321 = vmatprep.subr.mxu0 0.0
        %322 = vmatpush1.msra.mxu0 0.0
        %323 = vmatprep.subr.mxu0 0.0
        %324 = vmatpush1.msra.mxu0 0.0
        %325 = vmatprep.subr.mxu0 0.0
        %326 = vmatpush1.msra.mxu0 0.0
        %327 = vmatprep.subr.mxu0 0.0
        %328 = vmatpush1.msra.mxu0 0.0
        %329 = vmatprep.subr.mxu0 0.0
        %330 = vmatpush1.msra.mxu0 0.0
        %331 = vmatprep.subr.mxu0 0.0
        %332 = vmatpush1.msra.mxu0 0.0
        %333 = vmatprep.subr.mxu0 0.0
        %334 = vmatpush1.msra.mxu0 0.0
        %335 = vmatprep.subr.mxu0 0.0
        %336 = vmatpush1.msra.mxu0 0.0
        %337 = vmatprep.subr.mxu0 0.0
        %338 = vmatpush1.msra.mxu0 0.0
        %339 = vmatprep.subr.mxu0 0.0
        %340 = vmatpush1.msra.mxu0 0.0
        %341 = vmatprep.subr.mxu0 0.0
        %342 = vmatpush1.msra.mxu0 0.0
        %343 = vmatprep.subr.mxu0 0.0
        %344 = vmatpush1.msra.mxu0 0.0
        %345 = vmatprep.subr.mxu0 0.0
        %346 = vmatpush1.msra.mxu0 0.0
        %347 = vmatprep.mubr.f32.mxu0 0.0
        %348 = vmatmul.mubr.f32.gmra.mrb[0].mxu0 %v278
        %v349 = vpop.f32.mrb[0].mxu0
        %v350 = vadd.f32 0.0, %v349
        %v351 = vpop.f32.mrb[0].mxu0
        %352 = vdwg.mxu0
        %v353 = vmax.f32 %v350, 0.0
        %vm354 = vcmask 15360
        %v356 = vsel %vm354, %v275, 0
        %vm358 = vcmask 1041408
        %v360 = vsel %vm358, %v353, 0
        %362 = vmatprep.subr.mxu0 0.0
        %363 = vmatpush1.msra.mxu0 %v360
        %364 = vmatprep.subr.mxu0 0.0
        %365 = vmatpush1.msra.mxu0 0.0
        %366 = vmatprep.subr.mxu0 0.0
        %367 = vmatpush1.msra.mxu0 0.0
        %368 = vmatprep.subr.mxu0 0.0
        %369 = vmatpush1.msra.mxu0 0.0
        %370 = vmatprep.subr.mxu0 0.0
        %371 = vmatpush1.msra.mxu0 0.0
        %372 = vmatprep.subr.mxu0 0.0
        %373 = vmatpush1.msra.mxu0 0.0
        %374 = vmatprep.subr.mxu0 0.0
        %375 = vmatpush1.msra.mxu0 0.0
        %376 = vmatprep.subr.mxu0 0.0
        %377 = vmatpush1.msra.mxu0 0.0
        %378 = vmatprep.subr.mxu0 0.0
        %379 = vmatpush1.msra.mxu0 0.0
        %380 = vmatprep.subr.mxu0 0.0
        %381 = vmatpush1.msra.mxu0 0.0
        %382 = vmatprep.subr.mxu0 0.0
        %383 = vmatpush1.msra.mxu0 0.0
        %384 = vmatprep.subr.mxu0 0.0
        %385 = vmatpush1.msra.mxu0 0.0
        %386 = vmatprep.subr.mxu0 0.0
        %387 = vmatpush1.msra.mxu0 0.0
        %388 = vmatprep.subr.mxu0 0.0
        %389 = vmatpush1.msra.mxu0 0.0
        %390 = vmatprep.subr.mxu0 0.0
        %391 = vmatpush1.msra.mxu0 0.0
        %392 = vmatprep.subr.mxu0 0.0
        %393 = vmatpush1.msra.mxu0 0.0
        %394 = vmatprep.subr.mxu0 0.0
        %395 = vmatpush1.msra.mxu0 0.0
        %396 = vmatprep.subr.mxu0 0.0
        %397 = vmatpush1.msra.mxu0 0.0
        %398 = vmatprep.subr.mxu0 0.0
        %399 = vmatpush1.msra.mxu0 0.0
        %400 = vmatprep.subr.mxu0 0.0
        %401 = vmatpush1.msra.mxu0 0.0
        %402 = vmatprep.subr.mxu0 0.0
        %403 = vmatpush1.msra.mxu0 0.0
        %404 = vmatprep.subr.mxu0 0.0
        %405 = vmatpush1.msra.mxu0 0.0
        %406 = vmatprep.subr.mxu0 0.0
        %407 = vmatpush1.msra.mxu0 0.0
        %408 = vmatprep.subr.mxu0 0.0
        %409 = vmatpush1.msra.mxu0 0.0
        %410 = vmatprep.subr.mxu0 0.0
        %411 = vmatpush1.msra.mxu0 0.0
        %412 = vmatprep.subr.mxu0 0.0
        %413 = vmatpush1.msra.mxu0 0.0
        %414 = vmatprep.subr.mxu0 0.0
        %415 = vmatpush1.msra.mxu0 0.0
        %416 = vmatprep.subr.mxu0 0.0
        %417 = vmatpush1.msra.mxu0 0.0
        %418 = vmatprep.subr.mxu0 0.0
        %419 = vmatpush1.msra.mxu0 0.0
        %420 = vmatprep.subr.mxu0 0.0
        %421 = vmatpush1.msra.mxu0 0.0
        %422 = vmatprep.subr.mxu0 0.0
        %423 = vmatpush1.msra.mxu0 0.0
        %424 = vmatprep.subr.mxu0 0.0
        %425 = vmatpush1.msra.mxu0 0.0
        %426 = vmatprep.mubr.f32.mxu0 0.0
        %427 = vmatmul.mubr.f32.gmra.mrb[0].mxu0 %v356
        %v428 = vpop.f32.mrb[0].mxu0
        %v429 = vadd.f32 0.0, %v428
        %v430 = vpop.f32.mrb[0].mxu0
        %431 = vdwg.mxu0
        %433 = vrot.lane.b32.xlu0 %v429, 127
        %v434 = vpop.permute.xlu0 %433
        %v436 = vadd.f32 %v429, %v434
        %v437 = vxor.u32 %v436, 2147483648
        %v438 = vmul.f32 %v437, 1.442695
        %v439 = vpow.pop %v438
        %v440 = vadd.f32 %v439, 1.0
        %v441 = vrcp.pop %v440
        %v442 = vmul.f32 1.0, %v441
        %444 = vset.pattern.permute.xlu0 0
        %445 = vperm.xlu0 %444, %v442
        %v446 = vpop.permute.xlu0 %445
        %v448 = vunpack.c.l.s4 839922192
        %v449 = vunpack.c.0.s8 %v448
        %v450 = vlaneseq
        %v451 = vshrl.u32 %v450, 7
        %v452 = vsub.s32 %v449, %v451
        %v453 = vrot.slane %v446, %v452
        %v455 = vmul.f32 %v187, %v453
        %456 = vst [vmem:[%s186] sm:$0xff] %v455
        %s457 = sand.u32 %s96, 1
        %s458 = scalar_lea.sflag [#allocation4], %s457
        %s459 = sand.u32 %s96, 1
        %s460 = smul.addr %s459, 8
        %s461 = scalar_lea.vmem [#allocation5], %s460
        // Predicated region
        $region37: #{tpu_custom_call.1} parent=31 // pred_check
          %p462 = pneg %p106
        $region38: #{tpu_custom_call.1} parent=31 // pred_check_branch
          %464 = sbr.rel (%p462) target = $region40
        $region39: #{tpu_custom_call.1} parent=31 // pred_region
          %s466 = ssub.s32 128, 128
          %467 = vsyncadd %s458, %s466
          %s468 = smul.addr %s20, 2
          %s469 = smul.addr %s468, 64
          %s470 = scalar_lea.hbm %s3, %s469
          %s472 = sshll.u32 %s461, 4
          %s473 = int_to_ptr.vmem [resolvable:$true] %s472
          %475 = dma.vmem_to_hbm [thread:$0]  %s473, 128, %s470, %s458
        $region40: #{tpu_custom_call.1} parent=31 // pred_fallthru
          _
      $region32: #{tpu_custom_call.1} parent=5 // pred_fallthru
        _
      %p476 = scmp.le.s32.totalorder 2, %s15
      // Predicated region
      $region41: #{tpu_custom_call.1} parent=5 // pred_check
        %p477 = pneg %p476
      $region42: #{tpu_custom_call.1} parent=5 // pred_check_branch
        %479 = sbr.rel (%p477) target = $region44
      $region43: #{tpu_custom_call.1} parent=5 // pred_region
        %s480 = ssub.s32 %s15, 2
        // Predicated region
        $region45: #{tpu_custom_call.1} parent=43 // pred_check
          %p481 = pneg %p112
        $region46: #{tpu_custom_call.1} parent=43 // pred_check_branch
          %483 = sbr.rel (%p481) target = $region48
        $region47: #{tpu_custom_call.1} parent=43 // pred_region
          %s484 = sand.u32 %s97, 1
          %s485 = scalar_lea.sflag [#allocation4], %s484
          %s486 = sand.u32 %s97, 1
          %s487 = smul.addr %s486, 8
          %s488 = scalar_lea.vmem [#allocation5], %s487
          %489 = dma.done %s485, 128
        $region48: #{tpu_custom_call.1} parent=43 // pred_fallthru
          _
      $region44: #{tpu_custom_call.1} parent=5 // pred_fallthru
        _
    $region6: #{tpu_custom_call.1} parent=1 // loop_footer
      %s19 = sadd.s32 1, %s15
    $region7: #{tpu_custom_call.1} parent=1 // loop_footer_branch
      %14 = sbr.rel target = $region3
    $region8: #{tpu_custom_call.1} parent=1 // loop_exit
      _
    %490 = vsyncpa [#allocation3], 1
    %s491 = scalar_lea.sflag [#allocation3], 1
    %492 = vsyncpa %s491, 1
    %493 = vsyncpa [#allocation4], 1
    %s494 = scalar_lea.sflag [#allocation4], 1
    %495 = vsyncpa %s494, 1

</llo_original>
